<compile_context>
chip_gen: v5e
topology: v5e:2x2
jax: 0.10.0
libtpu: 0.0.40
codegen_flags: <defaults>
</compile_context>

<pallas_src>
from functools import partial

import jax
import jax.numpy as jnp
from jax.experimental import pallas as pl
from jax.experimental.pallas import tpu as pltpu

DIMS = [(384, 64), (64, 128), (128, 32), (32, 2)]
IN_DIM = DIMS[0][0]
OUT_DIM = DIMS[-1][1]

_VMEM_LIMIT_BYTES = 48 * 1024 * 1024  # < 64 MiB physical on v7x; >> 16 MiB v5e default


def mlp_kernel(x_ref, w1_ref, b1_ref, w2_ref, b2_ref,
               w3_ref, b3_ref, w4_ref, b4_ref, o_ref):
    bf16 = jnp.bfloat16
    # Cast the f32 input tile to bf16 in-kernel (VPU) -> x is read from HBM once.
    x = x_ref[...].astype(bf16)
    # fc1 + relu  (bf16 operands -> MXU, f32 accumulate; bias/relu in f32)
    h = jnp.dot(x, w1_ref[...], preferred_element_type=jnp.float32)
    h = jnp.maximum(h + b1_ref[...], 0.0)
    # fc2 + relu
    h = jnp.dot(h.astype(bf16), w2_ref[...], preferred_element_type=jnp.float32)
    h = jnp.maximum(h + b2_ref[...], 0.0)
    # fc3 + relu
    h = jnp.dot(h.astype(bf16), w3_ref[...], preferred_element_type=jnp.float32)
    h = jnp.maximum(h + b3_ref[...], 0.0)
    # fc4 (no activation)
    h = jnp.dot(h.astype(bf16), w4_ref[...], preferred_element_type=jnp.float32)
    o_ref[...] = (h + b4_ref[...]).astype(o_ref.dtype)


def _round_up(n, m):
    return (n + m - 1) // m * m


def prepare_params(params):
    """One-time (outside the per-call path) bf16 cast of the weight matrices.

    Biases stay f32 (bias-add / ReLU run in f32 on the VPU).
    """
    prepared = {}
    for i in range(1, 5):
        prepared[f"w{i}"] = params[f"w{i}"].astype(jnp.bfloat16)
        prepared[f"b{i}"] = params[f"b{i}"].astype(jnp.float32)
    return prepared


@partial(jax.jit, static_argnames=("block_b",))
def four_layer_mlp(x, prepared_params, *, block_b=4096):
    """x: [B, 384] f32. prepared_params: w{i} [in, out] bf16, b{i} [1, out] f32."""
    B, D = x.shape
    assert D == IN_DIM

    # Batch tile: multiple of 8 (sublane), capped at block_b.
    # VMEM @ TB=4096: x f32 in-buffers 2x6 MB, lane-padded out 2x2 MB,
    # resident weights ~0.15 MB, f32/bf16 intermediates ~8.5 MB  => ~25 MB.
    TB = min(block_b, _round_up(B, 8))
    grid = (pl.cdiv(B, TB),)   # ragged last tile handled by Pallas write-masking

    def const_spec(arr):
        # Full-array block pinned to block index (0, 0): stays VMEM-resident.
        return pl.BlockSpec(arr.shape, lambda i: (0, 0))

    in_specs = [pl.BlockSpec((TB, D), lambda i: (i, 0))]   # f32 x, cast in-kernel
    args = [x]
    for i in range(1, 5):
        w, b = prepared_params[f"w{i}"], prepared_params[f"b{i}"]
        in_specs += [const_spec(w), const_spec(b)]
        args += [w, b]

    flops = 2 * B * sum(fi * fo for fi, fo in DIMS)
    weight_bytes = sum(fi * fo * 2 + fo * 4 for fi, fo in DIMS)
    bytes_accessed = B * D * 4 + B * OUT_DIM * 4 + weight_bytes   # f32 x in-kernel

    return pl.pallas_call(
        mlp_kernel,
        out_shape=jax.ShapeDtypeStruct((B, OUT_DIM), jnp.float32),
        grid=grid,
        in_specs=in_specs,
        out_specs=pl.BlockSpec((TB, OUT_DIM), lambda i: (i, 0)),
        compiler_params=pltpu.CompilerParams(
            dimension_semantics=("parallel",),
            vmem_limit_bytes=_VMEM_LIMIT_BYTES),
        cost_estimate=pl.CostEstimate(
            flops=flops, transcendentals=0, bytes_accessed=bytes_accessed),
    )(*args)


def init_params(key):
    """Deterministic init mimicking nn.Linear default (uniform +-1/sqrt(fan_in))."""
    params = {}
    for i, (fan_in, fan_out) in enumerate(DIMS, start=1):
        key, kw, kb = jax.random.split(key, 3)
        bound = 1.0 / jnp.sqrt(fan_in)
        # stored as [in, out] (transpose of PyTorch's [out, in]) for x @ W
        params[f"w{i}"] = jax.random.uniform(
            kw, (fan_in, fan_out), jnp.float32, -bound, bound)
        params[f"b{i}"] = jax.random.uniform(
            kb, (1, fan_out), jnp.float32, -bound, bound)
    return params


def reference_mlp_f32(x, params):
    h = jnp.maximum(x @ params["w1"] + params["b1"], 0.0)
    h = jnp.maximum(h @ params["w2"] + params["b2"], 0.0)
    h = jnp.maximum(h @ params["w3"] + params["b3"], 0.0)
    return h @ params["w4"] + params["b4"]


def reference_mlp_bf16(x, params):
    """Reference applying the same bf16 operand quantization as the kernel."""
    bf = jnp.bfloat16
    h = x.astype(bf)
    for i in range(1, 5):
        h = jnp.dot(h, params[f"w{i}"].astype(bf),
                    preferred_element_type=jnp.float32) + params[f"b{i}"]
        if i < 4:
            h = jnp.maximum(h, 0.0).astype(bf)
    return h


if __name__ == "__main__":
    key = jax.random.PRNGKey(0)
    key, kx = jax.random.split(key)
    batch = 8
    x = jax.random.normal(kx, (batch, IN_DIM), jnp.float32)
    params = init_params(key)
    prepared = prepare_params(params)   # one-time bf16 weight cast

    out = four_layer_mlp(x, prepared)
    out = jax.block_until_ready(out)
    assert out.shape == (batch, OUT_DIM)

    # Tight check vs a reference with the same bf16 operand quantization.
    ref_bf16 = reference_mlp_bf16(x, params)
    assert jnp.allclose(out, ref_bf16, atol=1e-3, rtol=1e-3), (
        jnp.max(jnp.abs(out - ref_bf16)))
    # Loose sanity check vs the pure-f32 PyTorch-equivalent forward.
    ref_f32 = reference_mlp_f32(x, params)
    assert jnp.allclose(out, ref_f32, atol=5e-2, rtol=5e-2), (
        jnp.max(jnp.abs(out - ref_f32)))

    print("KERNEL_OK")
</pallas_src>

<mosaic_0001>
module attributes {stable_mosaic.version = 11 : i64} {
  func.func @mlp_kernel(%arg0: i32, %arg1: memref<8x384xf32, #tpu.memory_space<vmem>>, %arg2: memref<384x64xbf16, #tpu.memory_space<vmem>>, %arg3: memref<1x64xf32, #tpu.memory_space<vmem>>, %arg4: memref<64x128xbf16, #tpu.memory_space<vmem>>, %arg5: memref<1x128xf32, #tpu.memory_space<vmem>>, %arg6: memref<128x32xbf16, #tpu.memory_space<vmem>>, %arg7: memref<1x32xf32, #tpu.memory_space<vmem>>, %arg8: memref<32x2xbf16, #tpu.memory_space<vmem>>, %arg9: memref<1x2xf32, #tpu.memory_space<vmem>>, %arg10: memref<8x2xf32, #tpu.memory_space<vmem>>) attributes {dimension_semantics = [#tpu.dimension_semantics<parallel>], iteration_bounds = array<i64: 1>, scalar_prefetch = 0 : i64, scratch_operands = 0 : i64, tpu.core_type = #tpu.core_type<tc>, window_params = [{transform_indices = @transform_0, window_bounds = array<i64: 8, 384>}, {pipeline_mode = #tpu.pipeline_mode<synchronous>, transform_indices = @transform_1, window_bounds = array<i64: 384, 64>}, {pipeline_mode = #tpu.pipeline_mode<synchronous>, transform_indices = @transform_2, window_bounds = array<i64: 1, 64>}, {pipeline_mode = #tpu.pipeline_mode<synchronous>, transform_indices = @transform_3, window_bounds = array<i64: 64, 128>}, {pipeline_mode = #tpu.pipeline_mode<synchronous>, transform_indices = @transform_4, window_bounds = array<i64: 1, 128>}, {pipeline_mode = #tpu.pipeline_mode<synchronous>, transform_indices = @transform_5, window_bounds = array<i64: 128, 32>}, {pipeline_mode = #tpu.pipeline_mode<synchronous>, transform_indices = @transform_6, window_bounds = array<i64: 1, 32>}, {pipeline_mode = #tpu.pipeline_mode<synchronous>, transform_indices = @transform_7, window_bounds = array<i64: 32, 2>}, {pipeline_mode = #tpu.pipeline_mode<synchronous>, transform_indices = @transform_8, window_bounds = array<i64: 1, 2>}, {transform_indices = @transform_9, window_bounds = array<i64: 8, 2>}]} {
    %c0 = arith.constant 0 : index
    %c0_0 = arith.constant 0 : index
    %0 = vector.load %arg1[%c0, %c0_0] : memref<8x384xf32, #tpu.memory_space<vmem>>, vector<8x384xf32>
    %1 = arith.truncf %0 : vector<8x384xf32> to vector<8x384xbf16>
    %c0_1 = arith.constant 0 : index
    %c0_2 = arith.constant 0 : index
    %2 = vector.load %arg2[%c0_1, %c0_2] : memref<384x64xbf16, #tpu.memory_space<vmem>>, vector<384x64xbf16>
    %cst = arith.constant dense<0.000000e+00> : vector<8x64xf32>
    %3 = tpu.matmul %1, %2, %cst {dimension_numbers = #tpu.dot_dimension_numbers<[1], [0], [0], [1], [0, 0, 1, 1], [], []>} : vector<8x384xbf16>, vector<384x64xbf16>, vector<8x64xf32> -> vector<8x64xf32>
    %c0_3 = arith.constant 0 : index
    %c0_4 = arith.constant 0 : index
    %4 = vector.load %arg3[%c0_3, %c0_4] : memref<1x64xf32, #tpu.memory_space<vmem>>, vector<1x64xf32>
    %5 = vector.broadcast %4 : vector<1x64xf32> to vector<8x64xf32>
    %6 = arith.addf %3, %5 : vector<8x64xf32>
    %cst_5 = arith.constant 0.000000e+00 : f32
    %7 = vector.broadcast %cst_5 : f32 to vector<8x64xf32>
    %8 = arith.maximumf %6, %7 : vector<8x64xf32>
    %9 = arith.truncf %8 : vector<8x64xf32> to vector<8x64xbf16>
    %c0_6 = arith.constant 0 : index
    %c0_7 = arith.constant 0 : index
    %10 = vector.load %arg4[%c0_6, %c0_7] : memref<64x128xbf16, #tpu.memory_space<vmem>>, vector<64x128xbf16>
    %cst_8 = arith.constant dense<0.000000e+00> : vector<8x128xf32>
    %11 = tpu.matmul %9, %10, %cst_8 {dimension_numbers = #tpu.dot_dimension_numbers<[1], [0], [0], [1], [0, 0, 1, 1], [], []>} : vector<8x64xbf16>, vector<64x128xbf16>, vector<8x128xf32> -> vector<8x128xf32>
    %c0_9 = arith.constant 0 : index
    %c0_10 = arith.constant 0 : index
    %12 = vector.load %arg5[%c0_9, %c0_10] : memref<1x128xf32, #tpu.memory_space<vmem>>, vector<1x128xf32>
    %13 = vector.broadcast %12 : vector<1x128xf32> to vector<8x128xf32>
    %14 = arith.addf %11, %13 : vector<8x128xf32>
    %cst_11 = arith.constant 0.000000e+00 : f32
    %15 = vector.broadcast %cst_11 : f32 to vector<8x128xf32>
    %16 = arith.maximumf %14, %15 : vector<8x128xf32>
    %17 = arith.truncf %16 : vector<8x128xf32> to vector<8x128xbf16>
    %c0_12 = arith.constant 0 : index
    %c0_13 = arith.constant 0 : index
    %18 = vector.load %arg6[%c0_12, %c0_13] : memref<128x32xbf16, #tpu.memory_space<vmem>>, vector<128x32xbf16>
    %cst_14 = arith.constant dense<0.000000e+00> : vector<8x32xf32>
    %19 = tpu.matmul %17, %18, %cst_14 {dimension_numbers = #tpu.dot_dimension_numbers<[1], [0], [0], [1], [0, 0, 1, 1], [], []>} : vector<8x128xbf16>, vector<128x32xbf16>, vector<8x32xf32> -> vector<8x32xf32>
    %c0_15 = arith.constant 0 : index
    %c0_16 = arith.constant 0 : index
    %20 = vector.load %arg7[%c0_15, %c0_16] : memref<1x32xf32, #tpu.memory_space<vmem>>, vector<1x32xf32>
    %21 = vector.broadcast %20 : vector<1x32xf32> to vector<8x32xf32>
    %22 = arith.addf %19, %21 : vector<8x32xf32>
    %cst_17 = arith.constant 0.000000e+00 : f32
    %23 = vector.broadcast %cst_17 : f32 to vector<8x32xf32>
    %24 = arith.maximumf %22, %23 : vector<8x32xf32>
    %25 = arith.truncf %24 : vector<8x32xf32> to vector<8x32xbf16>
    %c0_18 = arith.constant 0 : index
    %c0_19 = arith.constant 0 : index
    %26 = vector.load %arg8[%c0_18, %c0_19] : memref<32x2xbf16, #tpu.memory_space<vmem>>, vector<32x2xbf16>
    %cst_20 = arith.constant dense<0.000000e+00> : vector<8x2xf32>
    %27 = tpu.matmul %25, %26, %cst_20 {dimension_numbers = #tpu.dot_dimension_numbers<[1], [0], [0], [1], [0, 0, 1, 1], [], []>} : vector<8x32xbf16>, vector<32x2xbf16>, vector<8x2xf32> -> vector<8x2xf32>
    %c0_21 = arith.constant 0 : index
    %c0_22 = arith.constant 0 : index
    %28 = vector.load %arg9[%c0_21, %c0_22] : memref<1x2xf32, #tpu.memory_space<vmem>>, vector<1x2xf32>
    %29 = vector.broadcast %28 : vector<1x2xf32> to vector<8x2xf32>
    %30 = arith.addf %27, %29 : vector<8x2xf32>
    %c0_23 = arith.constant 0 : index
    %c0_24 = arith.constant 0 : index
    %31 = vector.load %arg10[%c0_23, %c0_24] : memref<8x2xf32, #tpu.memory_space<vmem>>, vector<8x2xf32>
    tpu.vector_store %arg10[%c0_23, %c0_24], %30 {strides = array<i32>} : memref<8x2xf32, #tpu.memory_space<vmem>>, vector<8x2xf32>,
    return
  }
  func.func @transform_0(%arg0: i32) -> (i32, i32) {
    %c0_i32 = arith.constant 0 : i32
    %c0_i32_0 = arith.constant 0 : i32
    return %arg0, %c0_i32 : i32, i32
  }
  func.func @transform_1(%arg0: i32) -> (i32, i32) {
    %c0_i32 = arith.constant 0 : i32
    %c0_i32_0 = arith.constant 0 : i32
    %c0_i32_1 = arith.constant 0 : i32
    return %c0_i32, %c0_i32_0 : i32, i32
  }
  func.func @transform_2(%arg0: i32) -> (i32, i32) {
    %c0_i32 = arith.constant 0 : i32
    %c0_i32_0 = arith.constant 0 : i32
    %c0_i32_1 = arith.constant 0 : i32
    return %c0_i32, %c0_i32_0 : i32, i32
  }
  func.func @transform_3(%arg0: i32) -> (i32, i32) {
    %c0_i32 = arith.constant 0 : i32
    %c0_i32_0 = arith.constant 0 : i32
    %c0_i32_1 = arith.constant 0 : i32
    return %c0_i32, %c0_i32_0 : i32, i32
  }
  func.func @transform_4(%arg0: i32) -> (i32, i32) {
    %c0_i32 = arith.constant 0 : i32
    %c0_i32_0 = arith.constant 0 : i32
    %c0_i32_1 = arith.constant 0 : i32
    return %c0_i32, %c0_i32_0 : i32, i32
  }
  func.func @transform_5(%arg0: i32) -> (i32, i32) {
    %c0_i32 = arith.constant 0 : i32
    %c0_i32_0 = arith.constant 0 : i32
    %c0_i32_1 = arith.constant 0 : i32
    return %c0_i32, %c0_i32_0 : i32, i32
  }
  func.func @transform_6(%arg0: i32) -> (i32, i32) {
    %c0_i32 = arith.constant 0 : i32
    %c0_i32_0 = arith.constant 0 : i32
    %c0_i32_1 = arith.constant 0 : i32
    return %c0_i32, %c0_i32_0 : i32, i32
  }
  func.func @transform_7(%arg0: i32) -> (i32, i32) {
    %c0_i32 = arith.constant 0 : i32
    %c0_i32_0 = arith.constant 0 : i32
    %c0_i32_1 = arith.constant 0 : i32
    return %c0_i32, %c0_i32_0 : i32, i32
  }
  func.func @transform_8(%arg0: i32) -> (i32, i32) {
    %c0_i32 = arith.constant 0 : i32
    %c0_i32_0 = arith.constant 0 : i32
    %c0_i32_1 = arith.constant 0 : i32
    return %c0_i32, %c0_i32_0 : i32, i32
  }
  func.func @transform_9(%arg0: i32) -> (i32, i32) {
    %c0_i32 = arith.constant 0 : i32
    %c0_i32_0 = arith.constant 0 : i32
    return %arg0, %c0_i32 : i32, i32
  }
}

</mosaic_0001>

<llo_original>
// kernel: four_layer_mlp.1
$region0: #{four_layer_mlp.1}
  #allocation0 [shape = 'u32[]', space=smem, size = 0x4, offset = 0x4, fixed_abs, tag = 'smem constant byte address 0x4 - core index']
  #allocation1 [shape = 'u32[72,128]{1,0:T(1,128)}', space=vmem, size = 0x9000, scoped, tag = 'internal scratch']
  %s0 = inlined_call_operand.vmem [shape: f32[8,384], index: 0, kind: input, shape index: {}]
  %s1 = inlined_call_operand.vmem [shape: bf16[384,64], index: 1, kind: input, shape index: {}]
  %s2 = inlined_call_operand.vmem [shape: f32[1,64], index: 2, kind: input, shape index: {}]
  %s3 = inlined_call_operand.vmem [shape: bf16[64,128], index: 3, kind: input, shape index: {}]
  %s4 = inlined_call_operand.vmem [shape: f32[1,128], index: 4, kind: input, shape index: {}]
  %s5 = inlined_call_operand.vmem [shape: bf16[128,32], index: 5, kind: input, shape index: {}]
  %s6 = inlined_call_operand.vmem [shape: f32[1,32], index: 6, kind: input, shape index: {}]
  %s7 = inlined_call_operand.vmem [shape: bf16[32,2], index: 7, kind: input, shape index: {}]
  %s8 = inlined_call_operand.vmem [shape: f32[1,2], index: 8, kind: input, shape index: {}]
  %s9 = inlined_call_operand.vmem [shape: f32[8,2], index: 9, kind: output, shape index: {}]
  %s10 = sld [smem:[#allocation0]]
  $region46: #{four_layer_mlp.1} parent=0
    _
  %s12 = ssub.s32 1, %s10
  %s13 = scalar_select 0, %s12, %s10
  // Predicated region
  $region2: #{four_layer_mlp.1} parent=0 // pred_check
    _
  $region3: #{four_layer_mlp.1} parent=0 // pred_check_branch
    %15 = sbr.rel (0) target = $region5
  $region4: #{four_layer_mlp.1} parent=0 // pred_region
    _
  $region5: #{four_layer_mlp.1} parent=0 // pred_fallthru
    _
  // Predicated region
  $region6: #{four_layer_mlp.1} parent=0 // pred_check
    _
  $region7: #{four_layer_mlp.1} parent=0 // pred_check_branch
    %17 = sbr.rel (0) target = $region9
  $region8: #{four_layer_mlp.1} parent=0 // pred_region
    _
  $region9: #{four_layer_mlp.1} parent=0 // pred_fallthru
    _
  // Predicated region
  $region10: #{four_layer_mlp.1} parent=0 // pred_check
    _
  $region11: #{four_layer_mlp.1} parent=0 // pred_check_branch
    %19 = sbr.rel (0) target = $region13
  $region12: #{four_layer_mlp.1} parent=0 // pred_region
    _
  $region13: #{four_layer_mlp.1} parent=0 // pred_fallthru
    _
  // Predicated region
  $region14: #{four_layer_mlp.1} parent=0 // pred_check
    _
  $region15: #{four_layer_mlp.1} parent=0 // pred_check_branch
    %21 = sbr.rel (0) target = $region17
  $region16: #{four_layer_mlp.1} parent=0 // pred_region
    _
  $region17: #{four_layer_mlp.1} parent=0 // pred_fallthru
    _
  // Predicated region
  $region18: #{four_layer_mlp.1} parent=0 // pred_check
    _
  $region19: #{four_layer_mlp.1} parent=0 // pred_check_branch
    %23 = sbr.rel (0) target = $region21
  $region20: #{four_layer_mlp.1} parent=0 // pred_region
    _
  $region21: #{four_layer_mlp.1} parent=0 // pred_fallthru
    _
  // Predicated region
  $region22: #{four_layer_mlp.1} parent=0 // pred_check
    _
  $region23: #{four_layer_mlp.1} parent=0 // pred_check_branch
    %25 = sbr.rel (0) target = $region25
  $region24: #{four_layer_mlp.1} parent=0 // pred_region
    _
  $region25: #{four_layer_mlp.1} parent=0 // pred_fallthru
    _
  // Predicated region
  $region26: #{four_layer_mlp.1} parent=0 // pred_check
    _
  $region27: #{four_layer_mlp.1} parent=0 // pred_check_branch
    %27 = sbr.rel (0) target = $region29
  $region28: #{four_layer_mlp.1} parent=0 // pred_region
    _
  $region29: #{four_layer_mlp.1} parent=0 // pred_fallthru
    _
  // Predicated region
  $region30: #{four_layer_mlp.1} parent=0 // pred_check
    _
  $region31: #{four_layer_mlp.1} parent=0 // pred_check_branch
    %29 = sbr.rel (0) target = $region33
  $region32: #{four_layer_mlp.1} parent=0 // pred_region
    _
  $region33: #{four_layer_mlp.1} parent=0 // pred_fallthru
    _
  // Predicated region
  $region34: #{four_layer_mlp.1} parent=0 // pred_check
    _
  $region35: #{four_layer_mlp.1} parent=0 // pred_check_branch
    %31 = sbr.rel (0) target = $region37
  $region36: #{four_layer_mlp.1} parent=0 // pred_region
    _
  $region37: #{four_layer_mlp.1} parent=0 // pred_fallthru
    _
  %v33 = vld [vmem:[%s0] sm:$0xff]
  %v34 = vld [vmem:[%s0 + $0x8] sm:$0xff]
  %v35 = vld [vmem:[%s0 + $0x10] sm:$0xff]
  %v36 = vpack.c.bf16 %v33, %v33
  %v37 = vpack.c.bf16 %v34, %v34
  %v38 = vpack.c.bf16 %v35, %v35
  %v39 = vld [vmem:[%s1] sm:$0xf]
  %v40 = vld [vmem:[%s1 + $0x4] sm:$0xf]
  %v41 = vld [vmem:[%s1 + $0x8] sm:$0xf]
  %v42 = vld [vmem:[%s1 + $0xc] sm:$0xf]
  %v43 = vld [vmem:[%s1 + $0x10] sm:$0xf]
  %v44 = vld [vmem:[%s1 + $0x14] sm:$0xf]
  %v45 = vld [vmem:[%s1 + $0x18] sm:$0xf]
  %v46 = vld [vmem:[%s1 + $0x1c] sm:$0xf]
  %v47 = vld [vmem:[%s1 + $0x20] sm:$0xf]
  %v48 = vld [vmem:[%s1 + $0x24] sm:$0xf]
  %v49 = vld [vmem:[%s1 + $0x28] sm:$0xf]
  %v50 = vld [vmem:[%s1 + $0x2c] sm:$0xf]
  %v51 = vld [vmem:[%s1 + $0x30] sm:$0xf]
  %v52 = vld [vmem:[%s1 + $0x34] sm:$0xf]
  %v53 = vld [vmem:[%s1 + $0x38] sm:$0xf]
  %v54 = vld [vmem:[%s1 + $0x3c] sm:$0xf]
  %v55 = vld [vmem:[%s1 + $0x40] sm:$0xf]
  %v56 = vld [vmem:[%s1 + $0x44] sm:$0xf]
  %v57 = vld [vmem:[%s1 + $0x48] sm:$0xf]
  %v58 = vld [vmem:[%s1 + $0x4c] sm:$0xf]
  %v59 = vld [vmem:[%s1 + $0x50] sm:$0xf]
  %v60 = vld [vmem:[%s1 + $0x54] sm:$0xf]
  %v61 = vld [vmem:[%s1 + $0x58] sm:$0xf]
  %v62 = vld [vmem:[%s1 + $0x5c] sm:$0xf]
  %v63 = vld [vmem:[%s1 + $0x60] sm:$0xf]
  %v64 = vld [vmem:[%s1 + $0x64] sm:$0xf]
  %v65 = vld [vmem:[%s1 + $0x68] sm:$0xf]
  %v66 = vld [vmem:[%s1 + $0x6c] sm:$0xf]
  %v67 = vld [vmem:[%s1 + $0x70] sm:$0xf]
  %v68 = vld [vmem:[%s1 + $0x74] sm:$0xf]
  %v69 = vld [vmem:[%s1 + $0x78] sm:$0xf]
  %v70 = vld [vmem:[%s1 + $0x7c] sm:$0xf]
  %v71 = vld [vmem:[%s1 + $0x80] sm:$0xf]
  %v72 = vld [vmem:[%s1 + $0x84] sm:$0xf]
  %v73 = vld [vmem:[%s1 + $0x88] sm:$0xf]
  %v74 = vld [vmem:[%s1 + $0x8c] sm:$0xf]
  %v75 = vld [vmem:[%s1 + $0x90] sm:$0xf]
  %v76 = vld [vmem:[%s1 + $0x94] sm:$0xf]
  %v77 = vld [vmem:[%s1 + $0x98] sm:$0xf]
  %v78 = vld [vmem:[%s1 + $0x9c] sm:$0xf]
  %v79 = vld [vmem:[%s1 + $0xa0] sm:$0xf]
  %v80 = vld [vmem:[%s1 + $0xa4] sm:$0xf]
  %v81 = vld [vmem:[%s1 + $0xa8] sm:$0xf]
  %v82 = vld [vmem:[%s1 + $0xac] sm:$0xf]
  %v83 = vld [vmem:[%s1 + $0xb0] sm:$0xf]
  %v84 = vld [vmem:[%s1 + $0xb4] sm:$0xf]
  %v85 = vld [vmem:[%s1 + $0xb8] sm:$0xf]
  %v86 = vld [vmem:[%s1 + $0xbc] sm:$0xf]
  %v87 = vld [vmem:[%s2] sm:$0x1]
  %v89 = vperm.slane %v87, 0
  %v139 = vunpack.c.l.b16 %v39
  %v140 = vunpack.c.l.b16 %v40
  %v141 = vunpack.c.l.b16 %v41
  %v142 = vunpack.c.l.b16 %v42
  %v143 = vunpack.c.l.b16 %v43
  %v144 = vunpack.c.l.b16 %v44
  %v145 = vunpack.c.l.b16 %v45
  %v146 = vunpack.c.l.b16 %v46
  %v147 = vunpack.c.l.b16 %v47
  %v148 = vunpack.c.l.b16 %v48
  %v149 = vunpack.c.l.b16 %v49
  %v150 = vunpack.c.l.b16 %v50
  %v151 = vunpack.c.l.b16 %v51
  %v152 = vunpack.c.l.b16 %v52
  %v153 = vunpack.c.l.b16 %v53
  %v154 = vunpack.c.l.b16 %v54
  %v155 = vunpack.c.l.b16 %v55
  %v156 = vunpack.c.l.b16 %v56
  %v157 = vunpack.c.l.b16 %v57
  %v158 = vunpack.c.l.b16 %v58
  %v159 = vunpack.c.l.b16 %v59
  %v160 = vunpack.c.l.b16 %v60
  %v161 = vunpack.c.l.b16 %v61
  %v162 = vunpack.c.l.b16 %v62
  %v163 = vunpack.c.l.b16 %v63
  %v164 = vunpack.c.l.b16 %v64
  %v165 = vunpack.c.l.b16 %v65
  %v166 = vunpack.c.l.b16 %v66
  %v167 = vunpack.c.l.b16 %v67
  %v168 = vunpack.c.l.b16 %v68
  %v169 = vunpack.c.l.b16 %v69
  %v170 = vunpack.c.l.b16 %v70
  %v171 = vunpack.c.l.b16 %v71
  %v172 = vunpack.c.l.b16 %v72
  %v173 = vunpack.c.l.b16 %v73
  %v174 = vunpack.c.l.b16 %v74
  %v175 = vunpack.c.l.b16 %v75
  %v176 = vunpack.c.l.b16 %v76
  %v177 = vunpack.c.l.b16 %v77
  %v178 = vunpack.c.l.b16 %v78
  %v179 = vunpack.c.l.b16 %v79
  %v180 = vunpack.c.l.b16 %v80
  %v181 = vunpack.c.l.b16 %v81
  %v182 = vunpack.c.l.b16 %v82
  %v183 = vunpack.c.l.b16 %v83
  %v184 = vunpack.c.l.b16 %v84
  %v185 = vunpack.c.l.b16 %v85
  %v186 = vunpack.c.l.b16 %v86
  %v187 = vpack.c.b16 %v140, %v139
  %v188 = vpack.c.b16 %v142, %v141
  %v189 = vpack.c.b16 %v144, %v143
  %v190 = vpack.c.b16 %v146, %v145
  %v191 = vpack.c.b16 %v148, %v147
  %v192 = vpack.c.b16 %v150, %v149
  %v193 = vpack.c.b16 %v152, %v151
  %v194 = vpack.c.b16 %v154, %v153
  %v195 = vpack.c.b16 %v156, %v155
  %v196 = vpack.c.b16 %v158, %v157
  %v197 = vpack.c.b16 %v160, %v159
  %v198 = vpack.c.b16 %v162, %v161
  %v199 = vpack.c.b16 %v164, %v163
  %v200 = vpack.c.b16 %v166, %v165
  %v201 = vpack.c.b16 %v168, %v167
  %v202 = vpack.c.b16 %v170, %v169
  %v203 = vpack.c.b16 %v172, %v171
  %v204 = vpack.c.b16 %v174, %v173
  %v205 = vpack.c.b16 %v176, %v175
  %v206 = vpack.c.b16 %v178, %v177
  %v207 = vpack.c.b16 %v180, %v179
  %v208 = vpack.c.b16 %v182, %v181
  %v209 = vpack.c.b16 %v184, %v183
  %v210 = vpack.c.b16 %v186, %v185
  %235 = vmatpush.bf16.msra.mxu0 %v194
  %236 = vmatpush.bf16.msra.mxu0 %v193
  %237 = vmatpush.bf16.msra.mxu0 %v192
  %238 = vmatpush.bf16.msra.mxu0 %v191
  %239 = vmatpush.bf16.msra.mxu0 %v190
  %240 = vmatpush.bf16.msra.mxu0 %v189
  %241 = vmatpush.bf16.msra.mxu0 %v188
  %242 = vmatpush.bf16.msra.mxu0 %v187
  %243 = vmatmul.bf16.gmra.mxu0 %v36
  %v244 = vpop.f32.mrf.mxu0
  %v245 = vadd.f32 %v89, %v244
  %v246 = vpop.f32.mrf.mxu0
  %247 = vdwg.mxu0
  %248 = vmatpush.bf16.msra.mxu0 %v202
  %249 = vmatpush.bf16.msra.mxu0 %v201
  %250 = vmatpush.bf16.msra.mxu0 %v200
  %251 = vmatpush.bf16.msra.mxu0 %v199
  %252 = vmatpush.bf16.msra.mxu0 %v198
  %253 = vmatpush.bf16.msra.mxu0 %v197
  %254 = vmatpush.bf16.msra.mxu0 %v196
  %255 = vmatpush.bf16.msra.mxu0 %v195
  %256 = vmatmul.bf16.gmra.mxu0 %v37
  %v257 = vpop.f32.mrf.mxu0
  %v258 = vadd.f32 %v245, %v257
  %v259 = vpop.f32.mrf.mxu0
  %260 = vdwg.mxu0
  %261 = vmatpush.bf16.msra.mxu0 %v210
  %262 = vmatpush.bf16.msra.mxu0 %v209
  %263 = vmatpush.bf16.msra.mxu0 %v208
  %264 = vmatpush.bf16.msra.mxu0 %v207
  %265 = vmatpush.bf16.msra.mxu0 %v206
  %266 = vmatpush.bf16.msra.mxu0 %v205
  %267 = vmatpush.bf16.msra.mxu0 %v204
  %268 = vmatpush.bf16.msra.mxu0 %v203
  %269 = vmatmul.bf16.gmra.mxu0 %v38
  %v270 = vpop.f32.mrf.mxu0
  %v271 = vadd.f32 %v258, %v270
  %v272 = vpop.f32.mrf.mxu0
  %273 = vdwg.mxu0
  %v274 = vmax.f32 %v271, 0.0
  %v275 = vpack.c.bf16 %v274, %v274
  %v276 = vld [vmem:[%s3] sm:$0xf]
  %v277 = vld [vmem:[%s3 + $0x4] sm:$0xf]
  %v278 = vld [vmem:[%s3 + $0x8] sm:$0xf]
  %v279 = vld [vmem:[%s3 + $0xc] sm:$0xf]
  %v280 = vld [vmem:[%s3 + $0x10] sm:$0xf]
  %v281 = vld [vmem:[%s3 + $0x14] sm:$0xf]
  %v282 = vld [vmem:[%s3 + $0x18] sm:$0xf]
  %v283 = vld [vmem:[%s3 + $0x1c] sm:$0xf]
  %v284 = vld [vmem:[%s4] sm:$0x1]
  %v286 = vperm.slane %v284, 0
  %v296 = vunpack.c.l.b16 %v276
  %v297 = vunpack.c.l.b16 %v277
  %v298 = vunpack.c.l.b16 %v278
  %v299 = vunpack.c.l.b16 %v279
  %v300 = vunpack.c.l.b16 %v280
  %v301 = vunpack.c.l.b16 %v281
  %v302 = vunpack.c.l.b16 %v282
  %v303 = vunpack.c.l.b16 %v283
  %v304 = vpack.c.b16 %v297, %v296
  %v305 = vpack.c.b16 %v299, %v298
  %v306 = vpack.c.b16 %v301, %v300
  %v307 = vpack.c.b16 %v303, %v302
  %vm312 = vcmask 523264
  %v314 = vsel %vm312, %v275, 0
  %316 = vmatpush.bf16.msra.mxu0 0
  %317 = vmatpush.bf16.msra.mxu0 0
  %318 = vmatpush.bf16.msra.mxu0 0
  %319 = vmatpush.bf16.msra.mxu0 0
  %320 = vmatpush.bf16.msra.mxu0 %v307
  %321 = vmatpush.bf16.msra.mxu0 %v306
  %322 = vmatpush.bf16.msra.mxu0 %v305
  %323 = vmatpush.bf16.msra.mxu0 %v304
  %324 = vmatmul.bf16.gmra.mxu0 %v314
  %v325 = vpop.f32.mrf.mxu0
  %v326 = vadd.f32 %v286, %v325
  %v327 = vpop.f32.mrf.mxu0
  %328 = vdwg.mxu0
  %v329 = vmax.f32 %v326, 0.0
  %v330 = vpack.c.bf16 %v329, %v329
  %v331 = vld [vmem:[%s5] sm:$0xf]
  %v332 = vld [vmem:[%s5 + $0x4] sm:$0xf]
  %v333 = vld [vmem:[%s5 + $0x8] sm:$0xf]
  %v334 = vld [vmem:[%s5 + $0xc] sm:$0xf]
  %v335 = vld [vmem:[%s5 + $0x10] sm:$0xf]
  %v336 = vld [vmem:[%s5 + $0x14] sm:$0xf]
  %v337 = vld [vmem:[%s5 + $0x18] sm:$0xf]
  %v338 = vld [vmem:[%s5 + $0x1c] sm:$0xf]
  %v339 = vld [vmem:[%s5 + $0x20] sm:$0xf]
  %v340 = vld [vmem:[%s5 + $0x24] sm:$0xf]
  %v341 = vld [vmem:[%s5 + $0x28] sm:$0xf]
  %v342 = vld [vmem:[%s5 + $0x2c] sm:$0xf]
  %v343 = vld [vmem:[%s5 + $0x30] sm:$0xf]
  %v344 = vld [vmem:[%s5 + $0x34] sm:$0xf]
  %v345 = vld [vmem:[%s5 + $0x38] sm:$0xf]
  %v346 = vld [vmem:[%s5 + $0x3c] sm:$0xf]
  %v347 = vld [vmem:[%s6] sm:$0x1]
  %v349 = vperm.slane %v347, 0
  %v367 = vunpack.c.l.b16 %v331
  %v368 = vunpack.c.l.b16 %v332
  %v369 = vunpack.c.l.b16 %v333
  %v370 = vunpack.c.l.b16 %v334
  %v371 = vunpack.c.l.b16 %v335
  %v372 = vunpack.c.l.b16 %v336
  %v373 = vunpack.c.l.b16 %v337
  %v374 = vunpack.c.l.b16 %v338
  %v375 = vunpack.c.l.b16 %v339
  %v376 = vunpack.c.l.b16 %v340
  %v377 = vunpack.c.l.b16 %v341
  %v378 = vunpack.c.l.b16 %v342
  %v379 = vunpack.c.l.b16 %v343
  %v380 = vunpack.c.l.b16 %v344
  %v381 = vunpack.c.l.b16 %v345
  %v382 = vunpack.c.l.b16 %v346
  %v383 = vpack.c.b16 %v368, %v367
  %v384 = vpack.c.b16 %v370, %v369
  %v385 = vpack.c.b16 %v372, %v371
  %v386 = vpack.c.b16 %v374, %v373
  %v387 = vpack.c.b16 %v376, %v375
  %v388 = vpack.c.b16 %v378, %v377
  %v389 = vpack.c.b16 %v380, %v379
  %v390 = vpack.c.b16 %v382, %v381
  %399 = vmatpush.bf16.msra.mxu0 %v390
  %400 = vmatpush.bf16.msra.mxu0 %v389
  %401 = vmatpush.bf16.msra.mxu0 %v388
  %402 = vmatpush.bf16.msra.mxu0 %v387
  %403 = vmatpush.bf16.msra.mxu0 %v386
  %404 = vmatpush.bf16.msra.mxu0 %v385
  %405 = vmatpush.bf16.msra.mxu0 %v384
  %406 = vmatpush.bf16.msra.mxu0 %v383
  %407 = vmatmul.bf16.gmra.mxu0 %v330
  %v408 = vpop.f32.mrf.mxu0
  %v409 = vadd.f32 %v349, %v408
  %v410 = vpop.f32.mrf.mxu0
  %411 = vdwg.mxu0
  %v412 = vmax.f32 %v409, 0.0
  %v413 = vpack.c.bf16 %v412, %v412
  %v414 = vld [vmem:[%s7] sm:$0xf]
  %v415 = vld [vmem:[%s7 + $0x4] sm:$0xf]
  %v416 = vld [vmem:[%s7 + $0x8] sm:$0xf]
  %v417 = vld [vmem:[%s7 + $0xc] sm:$0xf]
  %v418 = vld [vmem:[%s8] sm:$0x1]
  %v420 = vperm.slane %v418, 0
  %v426 = vunpack.c.l.b16 %v414
  %v427 = vunpack.c.l.b16 %v415
  %v428 = vunpack.c.l.b16 %v416
  %v429 = vunpack.c.l.b16 %v417
  %v430 = vpack.c.b16 %v427, %v426
  %v431 = vpack.c.b16 %v429, %v428
  %vm434 = vcmask 261120
  %v436 = vsel %vm434, %v413, 0
  %438 = vmatpush.bf16.msra.mxu0 0
  %439 = vmatpush.bf16.msra.mxu0 0
  %440 = vmatpush.bf16.msra.mxu0 0
  %441 = vmatpush.bf16.msra.mxu0 0
  %442 = vmatpush.bf16.msra.mxu0 0
  %443 = vmatpush.bf16.msra.mxu0 0
  %444 = vmatpush.bf16.msra.mxu0 %v431
  %445 = vmatpush.bf16.msra.mxu0 %v430
  %446 = vmatmul.bf16.gmra.mxu0 %v436
  %v447 = vpop.f32.mrf.mxu0
  %v448 = vadd.f32 %v420, %v447
  %v449 = vpop.f32.mrf.mxu0
  %450 = vdwg.mxu0
  %vm451 = vcmask 15360
  %452 = vst.msk [vmem:[%s9] sm:$0xff] %vm451, %v448
  // Predicated region
  $region38: #{four_layer_mlp.1} parent=0 // pred_check
    _
  $region39: #{four_layer_mlp.1} parent=0 // pred_check_branch
    %454 = sbr.rel (0) target = $region41
  $region40: #{four_layer_mlp.1} parent=0 // pred_region
    _
  $region41: #{four_layer_mlp.1} parent=0 // pred_fallthru
    _
  // Predicated region
  $region42: #{four_layer_mlp.1} parent=0 // pred_check
    _
  $region43: #{four_layer_mlp.1} parent=0 // pred_check_branch
    %456 = sbr.rel (0) target = $region45
  $region44: #{four_layer_mlp.1} parent=0 // pred_region
    _
  $region45: #{four_layer_mlp.1} parent=0 // pred_fallthru
    _

</llo_original>
